<compile_context>
chip_gen: v5e
topology: v5e:2x2
jax: 0.10.0
libtpu: 0.0.40
codegen_flags: <defaults>
</compile_context>

<pallas_src>
import functools

import jax
import jax.numpy as jnp
from jax.experimental import pallas as pl
from jax.experimental.pallas import tpu as pltpu


def _round_up(x, m):
    return (x + m - 1) // m * m


def _cdiv(a, b):
    return (a + b - 1) // b


def _vmem_budget_bytes():
    """Per-core VMEM budget: physical capacity minus headroom, clamped."""
    try:
        cap = int(pltpu.get_tpu_info().vmem_capacity_bytes)
    except Exception:
        cap = 64 << 20  # conservative fallback (v7x-sized)
    budget = cap - (16 << 20)  # Mosaic internal scratch / semaphores / slack
    return int(min(max(budget, 32 << 20), 112 << 20))


def _spec(shape, index_map, buffered=None):
    """BlockSpec with optional explicit buffer count (graceful fallback)."""
    if buffered is None:
        return pl.BlockSpec(shape, index_map)
    try:
        return pl.BlockSpec(shape, index_map, pipeline_mode=pl.Buffered(buffered))
    except TypeError:  # older jax without pipeline_mode kwarg
        return pl.BlockSpec(shape, index_map)


def _clip_mlp_kernel(x_ref, w1_ref, b1_ref, w2_ref, b2_ref, o_ref, acc_ref):
    # x_ref : (tm, Hp)   token tile, original activation dtype
    # w1_ref: (Hp, ti)   fc1 weight chunk (in, out), compute dtype
    # b1_ref: (1, ti)    fc1 bias chunk, f32
    # w2_ref: (ti, Hp)   fc2 weight chunk (in, out), compute dtype
    # b2_ref: (1, Hp)    fc2 bias, f32
    # acc_ref:(tm, Hp)   f32 accumulator across I chunks
    k = pl.program_id(1)

    @pl.when(k == 0)
    def _():
        acc_ref[...] = jnp.zeros_like(acc_ref)

    # Cast activations to the MXU input dtype in-kernel (weights are pre-cast).
    x = x_ref[...].astype(w1_ref.dtype)

    # fc1 on this I chunk: MXU matmul, f32 accumulation, f32 bias broadcast.
    h = jnp.dot(x, w1_ref[...], preferred_element_type=jnp.float32) + b1_ref[...]

    # quick_gelu in f32 (EUP sigmoid + VPU mul ride under MXU slack).
    h = h * jax.nn.sigmoid(1.702 * h)

    # fc2 partial product for this chunk, accumulated in f32.
    acc_ref[...] += jnp.dot(h.astype(w2_ref.dtype), w2_ref[...],
                            preferred_element_type=jnp.float32)

    @pl.when(k == pl.num_programs(1) - 1)
    def _():
        o_ref[...] = (acc_ref[...] + b2_ref[...]).astype(o_ref.dtype)


def prepare_clip_mlp_params(w1, b1, w2, b2, *, compute_dtype=jnp.bfloat16):
    """Pad to lane-dense shapes (multiples of 128) and cast ONCE at model load.

    w1: (H, I) fc1 weight stored (in, out) = nn.Linear.weight.T;  b1: (I,)
    w2: (I, H) fc2 weight stored (in, out);                        b2: (H,)
    """
    H, I = w1.shape
    Hp, Ip = _round_up(H, 128), _round_up(I, 128)
    cdt = jnp.dtype(compute_dtype)
    # TODO(synk): optional fp8 weight storage with per-channel scales for v7x.
    return dict(
        w1=jnp.pad(w1, ((0, Hp - H), (0, Ip - I))).astype(cdt),
        w2=jnp.pad(w2, ((0, Ip - I), (0, Hp - H))).astype(cdt),
        b1=jnp.pad(b1, (0, Ip - I)).astype(jnp.float32).reshape(1, Ip),
        b2=jnp.pad(b2, (0, Hp - H)).astype(jnp.float32).reshape(1, Hp),
    )


@functools.partial(jax.jit, static_argnames=("block_m",))
def clip_mlp_apply(hidden_states, params, *, block_m=512):
    """CLIPMLP forward. hidden_states: (B, S, H). params: prepare_clip_mlp_params()."""
    B, S, H = hidden_states.shape
    Hp, Ip = params["w1"].shape
    cdt = jnp.dtype(params["w1"].dtype)
    xdt = jnp.dtype(hidden_states.dtype)
    M = B * S

    # ---- token tile: round to compute-dtype sublane packing, keep >= 2 grid steps.
    pack = 16 if cdt.itemsize < 4 else 8
    tm = min(block_m, _round_up(M, pack))
    Mp = _round_up(M, tm)
    if Mp // tm < 2 and tm > 128:  # give both v7x TensorCores work when M allows
        tm = max(128, _round_up(_cdiv(M, 2), pack))
        Mp = _round_up(M, tm)

    # ---- VMEM budget and I-chunk size (ti must divide Ip, multiple of 128).
    budget = _vmem_budget_bytes()
    ws = cdt.itemsize
    fixed = (2 * tm * Hp * xdt.itemsize      # x tile, double-buffered
             + 2 * tm * Hp * xdt.itemsize    # out tile (output dtype), double-buffered
             + tm * Hp * 4                   # f32 accumulator scratch
             + Hp * 4                        # b2 (single-buffered)
             + (2 << 20))                    # slack

    def _chunk_bytes(ti, nbuf):
        # w1 + w2 chunks + b1 chunk (nbuf-buffered) + f32 intermediate + bf16 copy
        return nbuf * (2 * Hp * ti * ws + ti * 4) + tm * ti * 4 + tm * ti * ws

    ti = 128
    for d in range(Ip, 127, -128):
        if Ip % d != 0:
            continue
        nbuf = 1 if d == Ip else 2  # constant-index weights -> single buffer
        if fixed + _chunk_bytes(d, nbuf) <= budget:
            ti = d
            break
    ki = Ip // ti

    # ---- per-call activation padding only (weights already padded/cast).
    x2d = hidden_states.reshape(M, H)
    if Mp != M or Hp != H:
        x2d = jnp.pad(x2d, ((0, Mp - M), (0, Hp - H)))

    wbuf = 1 if ki == 1 else None  # None -> default double-buffering for streamed chunks
    grid = (Mp // tm, ki)

    cost = pl.CostEstimate(
        flops=4 * Mp * Hp * Ip,
        transcendentals=Mp * Ip,
        bytes_accessed=2 * Hp * Ip * ws + Mp * Hp * 2 * xdt.itemsize,
    )

    out2d = pl.pallas_call(
        _clip_mlp_kernel,
        out_shape=jax.ShapeDtypeStruct((Mp, Hp), hidden_states.dtype),
        grid_spec=pltpu.PrefetchScalarGridSpec(
            num_scalar_prefetch=0,
            grid=grid,
            in_specs=[
                _spec((tm, Hp), lambda i, k: (i, 0)),        # x tile (streamed over i)
                _spec((Hp, ti), lambda i, k: (0, k), wbuf),  # fc1 weight chunk
                _spec((1, ti), lambda i, k: (0, k), wbuf),   # fc1 bias chunk
                _spec((ti, Hp), lambda i, k: (k, 0), wbuf),  # fc2 weight chunk
                _spec((1, Hp), lambda i, k: (0, 0), 1),      # fc2 bias (resident)
            ],
            out_specs=pl.BlockSpec((tm, Hp), lambda i, k: (i, 0)),
            scratch_shapes=[pltpu.VMEM((tm, Hp), jnp.float32)],
        ),
        compiler_params=pltpu.CompilerParams(
            dimension_semantics=("parallel", "arbitrary"),
            vmem_limit_bytes=budget,
        ),
        cost_estimate=cost,
    )(x2d, params["w1"], params["b1"], params["w2"], params["b2"])

    return out2d[:M, :H].reshape(B, S, H)


def clip_mlp(hidden_states, w1, b1, w2, b2, *, compute_dtype=jnp.bfloat16, block_m=512):
    """Convenience wrapper (pads/casts weights per call; prefer prepare + apply)."""
    params = prepare_clip_mlp_params(w1, b1, w2, b2, compute_dtype=compute_dtype)
    return clip_mlp_apply(hidden_states, params, block_m=block_m)


def _reference(hidden_states, w1, b1, w2, b2):
    h = hidden_states @ w1 + b1
    h = h * jax.nn.sigmoid(1.702 * h)
    return h @ w2 + b2


if __name__ == "__main__":
    # Small CLIP-like config: hidden_size=32, intermediate_size=128, batch=2, seq=8.
    batch, seq, hidden_size, intermediate_size = 2, 8, 32, 128

    key = jax.random.PRNGKey(0)
    k_x, k_w1, k_b1, k_w2, k_b2 = jax.random.split(key, 5)

    hidden_states = jax.random.normal(k_x, (batch, seq, hidden_size), dtype=jnp.float32)
    # Parameters stored (in_features, out_features) == nn.Linear.weight.T.
    w1 = jax.random.normal(k_w1, (hidden_size, intermediate_size), dtype=jnp.float32) * 0.02
    b1 = jax.random.normal(k_b1, (intermediate_size,), dtype=jnp.float32) * 0.02
    w2 = jax.random.normal(k_w2, (intermediate_size, hidden_size), dtype=jnp.float32) * 0.02
    b2 = jax.random.normal(k_b2, (hidden_size,), dtype=jnp.float32) * 0.02

    ref = _reference(hidden_states, w1, b1, w2, b2)

    # f32 MXU-input path: tight check against the reference.
    params_f32 = prepare_clip_mlp_params(w1, b1, w2, b2, compute_dtype=jnp.float32)
    out_f32 = jax.block_until_ready(clip_mlp_apply(hidden_states, params_f32))
    assert out_f32.shape == (batch, seq, hidden_size)
    assert jnp.allclose(out_f32, ref, atol=1e-5, rtol=1e-5), "f32 mismatch vs reference"

    # Default bf16 MXU-input path (perf configuration): looser tolerance.
    params_bf16 = prepare_clip_mlp_params(w1, b1, w2, b2)  # bf16 weights, prepared once
    out_bf16 = jax.block_until_ready(clip_mlp_apply(hidden_states, params_bf16))
    assert out_bf16.shape == (batch, seq, hidden_size)
    assert jnp.allclose(out_bf16, ref, atol=2e-2, rtol=2e-2), "bf16 mismatch vs reference"

    print("KERNEL_OK")
</pallas_src>

<mosaic_0001>
module attributes {stable_mosaic.version = 11 : i64} {
  func.func @_clip_mlp_kernel(%arg0: i32, %arg1: i32, %arg2: memref<16x128xf32, #tpu.memory_space<vmem>>, %arg3: memref<128x128xf32, #tpu.memory_space<vmem>>, %arg4: memref<1x128xf32, #tpu.memory_space<vmem>>, %arg5: memref<128x128xf32, #tpu.memory_space<vmem>>, %arg6: memref<1x128xf32, #tpu.memory_space<vmem>>, %arg7: memref<16x128xf32, #tpu.memory_space<vmem>>, %arg8: memref<16x128xf32, #tpu.memory_space<vmem>>) attributes {dimension_semantics = [#tpu.dimension_semantics<parallel>, #tpu.dimension_semantics<arbitrary>], iteration_bounds = array<i64: 1, 1>, scalar_prefetch = 0 : i64, scratch_operands = 1 : i64, tpu.core_type = #tpu.core_type<tc>, window_params = [{transform_indices = @transform_0, window_bounds = array<i64: 16, 128>}, {pipeline_mode = #tpu.pipeline_mode<synchronous>, transform_indices = @transform_1, window_bounds = array<i64: 128, 128>}, {pipeline_mode = #tpu.pipeline_mode<synchronous>, transform_indices = @transform_2, window_bounds = array<i64: 1, 128>}, {pipeline_mode = #tpu.pipeline_mode<synchronous>, transform_indices = @transform_3, window_bounds = array<i64: 128, 128>}, {pipeline_mode = #tpu.pipeline_mode<synchronous>, transform_indices = @transform_4, window_bounds = array<i64: 1, 128>}, {transform_indices = @transform_5, window_bounds = array<i64: 16, 128>}]} {
    %c0_i32 = arith.constant 0 : i32
    %0 = arith.cmpi eq, %arg1, %c0_i32 : i32
    %1 = arith.extui %0 : i1 to i32
    %c0_i32_0 = arith.constant 0 : i32
    %2 = arith.cmpi ne, %1, %c0_i32_0 : i32
    scf.if %2 {
      %cst_17 = arith.constant 0.000000e+00 : f32
      %25 = vector.broadcast %cst_17 : f32 to vector<16x128xf32>
      %c0_18 = arith.constant 0 : index
      %c0_19 = arith.constant 0 : index
      %26 = vector.load %arg8[%c0_18, %c0_19] : memref<16x128xf32, #tpu.memory_space<vmem>>, vector<16x128xf32>
      tpu.vector_store %arg8[%c0_18, %c0_19], %25 {strides = array<i32>} : memref<16x128xf32, #tpu.memory_space<vmem>>, vector<16x128xf32>,
    } else {
    }
    %c0 = arith.constant 0 : index
    %c0_1 = arith.constant 0 : index
    %3 = vector.load %arg2[%c0, %c0_1] : memref<16x128xf32, #tpu.memory_space<vmem>>, vector<16x128xf32>
    %c0_2 = arith.constant 0 : index
    %c0_3 = arith.constant 0 : index
    %4 = vector.load %arg3[%c0_2, %c0_3] : memref<128x128xf32, #tpu.memory_space<vmem>>, vector<128x128xf32>
    %cst = arith.constant dense<0.000000e+00> : vector<16x128xf32>
    %5 = tpu.matmul %3, %4, %cst {dimension_numbers = #tpu.dot_dimension_numbers<[1], [0], [0], [1], [0, 0, 1, 1], [], []>} : vector<16x128xf32>, vector<128x128xf32>, vector<16x128xf32> -> vector<16x128xf32>
    %c0_4 = arith.constant 0 : index
    %c0_5 = arith.constant 0 : index
    %6 = vector.load %arg4[%c0_4, %c0_5] : memref<1x128xf32, #tpu.memory_space<vmem>>, vector<1x128xf32>
    %7 = vector.broadcast %6 : vector<1x128xf32> to vector<16x128xf32>
    %8 = arith.addf %5, %7 : vector<16x128xf32>
    %cst_6 = arith.constant 1.702000e+00 : f32
    %9 = vector.broadcast %cst_6 : f32 to vector<16x128xf32>
    %10 = arith.mulf %9, %8 : vector<16x128xf32>
    %11 = arith.negf %10 : vector<16x128xf32>
    %12 = math.exp %11 : vector<16x128xf32>
    %cst_7 = arith.constant 1.000000e+00 : f32
    %13 = vector.broadcast %cst_7 : f32 to vector<16x128xf32>
    %14 = arith.addf %13, %12 : vector<16x128xf32>
    %15 = arith.divf %13, %14 : vector<16x128xf32>
    %16 = arith.mulf %8, %15 : vector<16x128xf32>
    %c0_8 = arith.constant 0 : index
    %c0_9 = arith.constant 0 : index
    %17 = vector.load %arg8[%c0_8, %c0_9] : memref<16x128xf32, #tpu.memory_space<vmem>>, vector<16x128xf32>
    %c0_10 = arith.constant 0 : index
    %c0_11 = arith.constant 0 : index
    %18 = vector.load %arg5[%c0_10, %c0_11] : memref<128x128xf32, #tpu.memory_space<vmem>>, vector<128x128xf32>
    %cst_12 = arith.constant dense<0.000000e+00> : vector<16x128xf32>
    %19 = tpu.matmul %16, %18, %cst_12 {dimension_numbers = #tpu.dot_dimension_numbers<[1], [0], [0], [1], [0, 0, 1, 1], [], []>} : vector<16x128xf32>, vector<128x128xf32>, vector<16x128xf32> -> vector<16x128xf32>
    %20 = arith.addf %17, %19 : vector<16x128xf32>
    %c0_13 = arith.constant 0 : index
    %c0_14 = arith.constant 0 : index
    %21 = vector.load %arg8[%c0_13, %c0_14] : memref<16x128xf32, #tpu.memory_space<vmem>>, vector<16x128xf32>
    tpu.vector_store %arg8[%c0_13, %c0_14], %20 {strides = array<i32>} : memref<16x128xf32, #tpu.memory_space<vmem>>, vector<16x128xf32>,
    %c0_i32_15 = arith.constant 0 : i32
    %22 = arith.cmpi eq, %arg1, %c0_i32_15 : i32
    %23 = arith.extui %22 : i1 to i32
    %c0_i32_16 = arith.constant 0 : i32
    %24 = arith.cmpi ne, %23, %c0_i32_16 : i32
    scf.if %24 {
      %c0_17 = arith.constant 0 : index
      %c0_18 = arith.constant 0 : index
      %25 = vector.load %arg8[%c0_17, %c0_18] : memref<16x128xf32, #tpu.memory_space<vmem>>, vector<16x128xf32>
      %c0_19 = arith.constant 0 : index
      %c0_20 = arith.constant 0 : index
      %26 = vector.load %arg6[%c0_19, %c0_20] : memref<1x128xf32, #tpu.memory_space<vmem>>, vector<1x128xf32>
      %27 = vector.broadcast %26 : vector<1x128xf32> to vector<16x128xf32>
      %28 = arith.addf %25, %27 : vector<16x128xf32>
      %c0_21 = arith.constant 0 : index
      %c0_22 = arith.constant 0 : index
      %29 = vector.load %arg7[%c0_21, %c0_22] : memref<16x128xf32, #tpu.memory_space<vmem>>, vector<16x128xf32>
      tpu.vector_store %arg7[%c0_21, %c0_22], %28 {strides = array<i32>} : memref<16x128xf32, #tpu.memory_space<vmem>>, vector<16x128xf32>,
    } else {
    }
    return
  }
  func.func @transform_0(%arg0: i32, %arg1: i32) -> (i32, i32) {
    %c0_i32 = arith.constant 0 : i32
    %c0_i32_0 = arith.constant 0 : i32
    return %arg0, %c0_i32 : i32, i32
  }
  func.func @transform_1(%arg0: i32, %arg1: i32) -> (i32, i32) {
    %c0_i32 = arith.constant 0 : i32
    %c0_i32_0 = arith.constant 0 : i32
    return %c0_i32, %arg1 : i32, i32
  }
  func.func @transform_2(%arg0: i32, %arg1: i32) -> (i32, i32) {
    %c0_i32 = arith.constant 0 : i32
    %c0_i32_0 = arith.constant 0 : i32
    return %c0_i32, %arg1 : i32, i32
  }
  func.func @transform_3(%arg0: i32, %arg1: i32) -> (i32, i32) {
    %c0_i32 = arith.constant 0 : i32
    %c0_i32_0 = arith.constant 0 : i32
    return %arg1, %c0_i32 : i32, i32
  }
  func.func @transform_4(%arg0: i32, %arg1: i32) -> (i32, i32) {
    %c0_i32 = arith.constant 0 : i32
    %c0_i32_0 = arith.constant 0 : i32
    %c0_i32_1 = arith.constant 0 : i32
    return %c0_i32, %c0_i32_0 : i32, i32
  }
  func.func @transform_5(%arg0: i32, %arg1: i32) -> (i32, i32) {
    %c0_i32 = arith.constant 0 : i32
    %c0_i32_0 = arith.constant 0 : i32
    return %arg0, %c0_i32 : i32, i32
  }
}

</mosaic_0001>

<llo_original>
// kernel: clip_mlp_apply.1
$region0: #{clip_mlp_apply.1}
  #allocation0 [shape = 'u32[]', space=smem, size = 0x4, offset = 0x4, fixed_abs, tag = 'smem constant byte address 0x4 - core index']
  #allocation1 [shape = 'u32[72,128]{1,0:T(1,128)}', space=vmem, size = 0x9000, scoped, tag = 'internal scratch']
  #allocation2 [shape = 'f32[16,128]{1,0:T(8,128)}', space=vmem, size = 0x2000, scoped, tag = 'scratch operand']
  %s0 = inlined_call_operand.vmem [shape: f32[16,128], index: 0, kind: input, shape index: {}]
  %s1 = inlined_call_operand.hbm [shape: f32[128,128], index: 1, kind: input, shape index: {}]
  %s2 = inlined_call_operand.vmem [shape: f32[1,128], index: 2, kind: input, shape index: {}]
  %s3 = inlined_call_operand.hbm [shape: f32[128,128], index: 3, kind: input, shape index: {}]
  %s4 = inlined_call_operand.vmem [shape: f32[1,128], index: 4, kind: input, shape index: {}]
  %s5 = inlined_call_operand.vmem [shape: f32[16,128], index: 5, kind: output, shape index: {}]
  %s6 = sld [smem:[#allocation0]]
  $region46: #{clip_mlp_apply.1} parent=0
    _
  %s8 = ssub.s32 1, %s6
  %s9 = scalar_select 0, %s8, %s6
  $region1: #{clip_mlp_apply.1} parent=0
    #allocation3 [shape = 'u8[65536]{0}', space=vmem, size = 0x10000, scoped, tag = 'input window, operand 1, single buffered']
    #allocation4 [shape = 's32[1]{0}', space=sflag, size = 0x4, scoped, tag = 'scoped memory for clip_mlp_apply.1']
    #allocation5 [shape = 'u8[65536]{0}', space=vmem, size = 0x10000, scoped, tag = 'input window, operand 3, single buffered']
    #allocation6 [shape = 's32[1]{0}', space=sflag, size = 0x4, scoped, tag = 'scoped memory for clip_mlp_apply.1']
    %10 = vsyncpa [#allocation4], 0
    %11 = vsyncpa [#allocation6], 0
    // Predicated region
    $region2: #{clip_mlp_apply.1} parent=1 // pred_check
      _
    $region3: #{clip_mlp_apply.1} parent=1 // pred_check_branch
      %13 = sbr.rel (0) target = $region5
    $region4: #{clip_mlp_apply.1} parent=1 // pred_region
      _
    $region5: #{clip_mlp_apply.1} parent=1 // pred_fallthru
      _
    // Predicated region
    $region6: #{clip_mlp_apply.1} parent=1 // pred_check
      _
    $region7: #{clip_mlp_apply.1} parent=1 // pred_check_branch
      %15 = sbr.rel (0) target = $region9
    $region8: #{clip_mlp_apply.1} parent=1 // pred_region
      %17 = vsyncadd [#allocation4], 0
      %s18 = sshll.u32 %s1, 4
      %s19 = int_to_ptr.hbm [resolvable:$true] %s18
      %s20 = sshll.u32 [#allocation3], 4
      %s21 = int_to_ptr.vmem [resolvable:$true] %s20
      %26 = dma.hbm_to_vmem [thread:$0]  %s19, 2048, %s21, [#allocation4], 128, 128, 8
    $region9: #{clip_mlp_apply.1} parent=1 // pred_fallthru
      _
    // Predicated region
    $region10: #{clip_mlp_apply.1} parent=1 // pred_check
      _
    $region11: #{clip_mlp_apply.1} parent=1 // pred_check_branch
      %28 = sbr.rel (0) target = $region13
    $region12: #{clip_mlp_apply.1} parent=1 // pred_region
      _
    $region13: #{clip_mlp_apply.1} parent=1 // pred_fallthru
      _
    // Predicated region
    $region14: #{clip_mlp_apply.1} parent=1 // pred_check
      _
    $region15: #{clip_mlp_apply.1} parent=1 // pred_check_branch
      %30 = sbr.rel (0) target = $region17
    $region16: #{clip_mlp_apply.1} parent=1 // pred_region
      %32 = vsyncadd [#allocation6], 0
      %s33 = sshll.u32 %s3, 4
      %s34 = int_to_ptr.hbm [resolvable:$true] %s33
      %s35 = sshll.u32 [#allocation5], 4
      %s36 = int_to_ptr.vmem [resolvable:$true] %s35
      %41 = dma.hbm_to_vmem [thread:$0]  %s34, 2048, %s36, [#allocation6], 128, 128, 8
    $region17: #{clip_mlp_apply.1} parent=1 // pred_fallthru
      _
    // Predicated region
    $region18: #{clip_mlp_apply.1} parent=1 // pred_check
      _
    $region19: #{clip_mlp_apply.1} parent=1 // pred_check_branch
      %43 = sbr.rel (0) target = $region21
    $region20: #{clip_mlp_apply.1} parent=1 // pred_region
      _
    $region21: #{clip_mlp_apply.1} parent=1 // pred_fallthru
      _
    // Predicated region
    $region22: #{clip_mlp_apply.1} parent=1 // pred_check
      _
    $region23: #{clip_mlp_apply.1} parent=1 // pred_check_branch
      %45 = sbr.rel (0) target = $region25
    $region24: #{clip_mlp_apply.1} parent=1 // pred_region
      %47 = dma.done [#allocation4], 2048
    $region25: #{clip_mlp_apply.1} parent=1 // pred_fallthru
      _
    // Predicated region
    $region26: #{clip_mlp_apply.1} parent=1 // pred_check
      _
    $region27: #{clip_mlp_apply.1} parent=1 // pred_check_branch
      %49 = sbr.rel (0) target = $region29
    $region28: #{clip_mlp_apply.1} parent=1 // pred_region
      %51 = dma.done [#allocation6], 2048
    $region29: #{clip_mlp_apply.1} parent=1 // pred_fallthru
      _
    %p52 = scmp.eq.s32.totalorder 0, 0
    // Predicated region
    $region30: #{clip_mlp_apply.1} parent=1 // pred_check
      %p53 = pneg %p52
    $region31: #{clip_mlp_apply.1} parent=1 // pred_check_branch
      %55 = sbr.rel (%p53) target = $region33
    $region32: #{clip_mlp_apply.1} parent=1 // pred_region
      %56 = vst [vmem:[#allocation2] sm:$0xff] 0.0
      %57 = vst [vmem:[#allocation2 + $0x8] sm:$0xff] 0.0
    $region33: #{clip_mlp_apply.1} parent=1 // pred_fallthru
      _
    %v58 = vld [vmem:[%s0] sm:$0xff]
    %v59 = vld [vmem:[%s0 + $0x8] sm:$0xff]
    %v60 = vld [vmem:[#allocation3] sm:$0xff]
    %v61 = vld [vmem:[#allocation3 + $0x8] sm:$0xff]
    %v62 = vld [vmem:[#allocation3 + $0x10] sm:$0xff]
    %v63 = vld [vmem:[#allocation3 + $0x18] sm:$0xff]
    %v64 = vld [vmem:[#allocation3 + $0x20] sm:$0xff]
    %v65 = vld [vmem:[#allocation3 + $0x28] sm:$0xff]
    %v66 = vld [vmem:[#allocation3 + $0x30] sm:$0xff]
    %v67 = vld [vmem:[#allocation3 + $0x38] sm:$0xff]
    %v68 = vld [vmem:[#allocation3 + $0x40] sm:$0xff]
    %v69 = vld [vmem:[#allocation3 + $0x48] sm:$0xff]
    %v70 = vld [vmem:[#allocation3 + $0x50] sm:$0xff]
    %v71 = vld [vmem:[#allocation3 + $0x58] sm:$0xff]
    %v72 = vld [vmem:[#allocation3 + $0x60] sm:$0xff]
    %v73 = vld [vmem:[#allocation3 + $0x68] sm:$0xff]
    %v74 = vld [vmem:[#allocation3 + $0x70] sm:$0xff]
    %v75 = vld [vmem:[#allocation3 + $0x78] sm:$0xff]
    %v76 = vld [vmem:[%s2] sm:$0x1]
    %v78 = vperm.slane %v76, 0
    %80 = vmatpush.msra.mxu0 %v75
    %81 = vmatpush.msra.mxu0 %v74
    %82 = vmatpush.msra.mxu0 %v73
    %83 = vmatpush.msra.mxu0 %v72
    %84 = vmatpush.msra.mxu0 %v71
    %85 = vmatpush.msra.mxu0 %v70
    %86 = vmatpush.msra.mxu0 %v69
    %87 = vmatpush.msra.mxu0 %v68
    %88 = vmatpush.msra.mxu0 %v67
    %89 = vmatpush.msra.mxu0 %v66
    %90 = vmatpush.msra.mxu0 %v65
    %91 = vmatpush.msra.mxu0 %v64
    %92 = vmatpush.msra.mxu0 %v63
    %93 = vmatpush.msra.mxu0 %v62
    %94 = vmatpush.msra.mxu0 %v61
    %95 = vmatpush.msra.mxu0 %v60
    %96 = vmatmul.f32.gmra.mxu0 %v58
    %v97 = vpop.f32.mrf.mxu0
    %v98 = vadd.f32 %v78, %v97
    %99 = vmatmul.f32.gmra.mxu0 %v59
    %v100 = vpop.f32.mrf.mxu0
    %v101 = vadd.f32 %v78, %v100
    %102 = vdwg.mxu0
    %v103 = vmul.f32 %v98, 1.702
    %v104 = vmul.f32 %v101, 1.702
    %v105 = vxor.u32 %v103, 2147483648
    %v106 = vxor.u32 %v104, 2147483648
    %v107 = vmul.f32 %v105, 1.442695
    %v108 = vpow.pop %v107
    %v109 = vmul.f32 %v106, 1.442695
    %v110 = vpow.pop %v109
    %v111 = vadd.f32 %v108, 1.0
    %v112 = vadd.f32 %v110, 1.0
    %v113 = vrcp.pop %v111
    %v114 = vmul.f32 %v111, %v113
    %v115 = vsub.f32 1.0, %v114
    %v116 = vmul.f32 %v113, %v115
    %v117 = vadd.f32 %v113, %v116
    %vm118 = vweird.f32 %v111
    %vm119 = vweird.f32 %v113
    %vm120 = vmor %vm118, %vm119
    %v121 = vsel %vm120, %v113, %v117
    %v122 = vand.u32 2147483647, %v111
    %vm123 = vcmp.eq.f32.partialorder %v122, 8.507059e+37
    %v124 = vand.u32 %v111, 2147483648
    %v125 = vor.u32 1.1754944e-38, %v124
    %v126 = vsel %vm123, %v125, %v121
    %v127 = vmul.f32 1.0, %v126
    %v128 = vrcp.pop %v112
    %v129 = vmul.f32 %v112, %v128
    %v130 = vsub.f32 1.0, %v129
    %v131 = vmul.f32 %v128, %v130
    %v132 = vadd.f32 %v128, %v131
    %vm133 = vweird.f32 %v112
    %vm134 = vweird.f32 %v128
    %vm135 = vmor %vm133, %vm134
    %v136 = vsel %vm135, %v128, %v132
    %v137 = vand.u32 2147483647, %v112
    %vm138 = vcmp.eq.f32.partialorder %v137, 8.507059e+37
    %v139 = vand.u32 %v112, 2147483648
    %v140 = vor.u32 1.1754944e-38, %v139
    %v141 = vsel %vm138, %v140, %v136
    %v142 = vmul.f32 1.0, %v141
    %v143 = vmul.f32 %v98, %v127
    %v144 = vmul.f32 %v101, %v142
    %v145 = vld [vmem:[#allocation2] sm:$0xff]
    %v146 = vld [vmem:[#allocation2 + $0x8] sm:$0xff]
    %v147 = vld [vmem:[#allocation5] sm:$0xff]
    %v148 = vld [vmem:[#allocation5 + $0x8] sm:$0xff]
    %v149 = vld [vmem:[#allocation5 + $0x10] sm:$0xff]
    %v150 = vld [vmem:[#allocation5 + $0x18] sm:$0xff]
    %v151 = vld [vmem:[#allocation5 + $0x20] sm:$0xff]
    %v152 = vld [vmem:[#allocation5 + $0x28] sm:$0xff]
    %v153 = vld [vmem:[#allocation5 + $0x30] sm:$0xff]
    %v154 = vld [vmem:[#allocation5 + $0x38] sm:$0xff]
    %v155 = vld [vmem:[#allocation5 + $0x40] sm:$0xff]
    %v156 = vld [vmem:[#allocation5 + $0x48] sm:$0xff]
    %v157 = vld [vmem:[#allocation5 + $0x50] sm:$0xff]
    %v158 = vld [vmem:[#allocation5 + $0x58] sm:$0xff]
    %v159 = vld [vmem:[#allocation5 + $0x60] sm:$0xff]
    %v160 = vld [vmem:[#allocation5 + $0x68] sm:$0xff]
    %v161 = vld [vmem:[#allocation5 + $0x70] sm:$0xff]
    %v162 = vld [vmem:[#allocation5 + $0x78] sm:$0xff]
    %163 = vmatpush.msra.mxu0 %v162
    %164 = vmatpush.msra.mxu0 %v161
    %165 = vmatpush.msra.mxu0 %v160
    %166 = vmatpush.msra.mxu0 %v159
    %167 = vmatpush.msra.mxu0 %v158
    %168 = vmatpush.msra.mxu0 %v157
    %169 = vmatpush.msra.mxu0 %v156
    %170 = vmatpush.msra.mxu0 %v155
    %171 = vmatpush.msra.mxu0 %v154
    %172 = vmatpush.msra.mxu0 %v153
    %173 = vmatpush.msra.mxu0 %v152
    %174 = vmatpush.msra.mxu0 %v151
    %175 = vmatpush.msra.mxu0 %v150
    %176 = vmatpush.msra.mxu0 %v149
    %177 = vmatpush.msra.mxu0 %v148
    %178 = vmatpush.msra.mxu0 %v147
    %179 = vmatmul.f32.gmra.mxu0 %v143
    %v180 = vpop.f32.mrf.mxu0
    %v181 = vadd.f32 0.0, %v180
    %182 = vmatmul.f32.gmra.mxu0 %v144
    %v183 = vpop.f32.mrf.mxu0
    %v184 = vadd.f32 0.0, %v183
    %185 = vdwg.mxu0
    %v186 = vadd.f32 %v145, %v181
    %v187 = vadd.f32 %v146, %v184
    %188 = vst [vmem:[#allocation2] sm:$0xff] %v186
    %189 = vst [vmem:[#allocation2 + $0x8] sm:$0xff] %v187
    // Predicated region
    $region34: #{clip_mlp_apply.1} parent=1 // pred_check
      %p190 = pneg %p52
    $region35: #{clip_mlp_apply.1} parent=1 // pred_check_branch
      %192 = sbr.rel (%p190) target = $region37
    $region36: #{clip_mlp_apply.1} parent=1 // pred_region
      %v193 = vld [vmem:[#allocation2] sm:$0xff]
      %v194 = vld [vmem:[#allocation2 + $0x8] sm:$0xff]
      %v195 = vld [vmem:[%s4] sm:$0x1]
      %v197 = vperm.slane %v195, 0
      %v199 = vadd.f32 %v193, %v197
      %v200 = vadd.f32 %v194, %v197
      %201 = vst [vmem:[%s5] sm:$0xff] %v199
      %202 = vst [vmem:[%s5 + $0x8] sm:$0xff] %v200
    $region37: #{clip_mlp_apply.1} parent=1 // pred_fallthru
      _
    // Predicated region
    $region38: #{clip_mlp_apply.1} parent=1 // pred_check
      _
    $region39: #{clip_mlp_apply.1} parent=1 // pred_check_branch
      %204 = sbr.rel (0) target = $region41
    $region40: #{clip_mlp_apply.1} parent=1 // pred_region
      _
    $region41: #{clip_mlp_apply.1} parent=1 // pred_fallthru
      _
    // Predicated region
    $region42: #{clip_mlp_apply.1} parent=1 // pred_check
      _
    $region43: #{clip_mlp_apply.1} parent=1 // pred_check_branch
      %206 = sbr.rel (0) target = $region45
    $region44: #{clip_mlp_apply.1} parent=1 // pred_region
      _
    $region45: #{clip_mlp_apply.1} parent=1 // pred_fallthru
      _
    %207 = vsyncpa [#allocation4], 1
    %208 = vsyncpa [#allocation6], 1

</llo_original>
